<compile_context>
chip_gen: v5e
topology: v5e:2x2
jax: 0.10.0
libtpu: 0.0.40
codegen_flags: <defaults>
</compile_context>

<pallas_src>
import jax
import jax.numpy as jnp
from jax.experimental import pallas as pl
from jax.experimental.pallas import tpu as pltpu

C_IN, C_MID1, C_MID2, C_OUT = 128, 64, 32, 3


def _decoder_kernel(x_ref, wt_ref, b_ref, o_ref):
    # x_ref:  (BN, 128, TM)  NCHW-native tile: channels on sublanes, pixels on lanes
    # wt_ref: (3, 128)       folded weights (w3 @ w2 @ w1), VMEM-resident
    # b_ref:  (3, 1)         final conv bias (f32)
    # o_ref:  (BN, 3, TM)    output tile (lane-dense, already NCHW)
    wt = wt_ref[...]
    bias = b_ref[...]
    # BN is a small static batch block -> unrolled at trace time.
    for n in range(x_ref.shape[0]):
        acc = jnp.dot(wt, x_ref[n], preferred_element_type=jnp.float32)
        o_ref[n] = (acc + bias).astype(o_ref.dtype)


def _pick_tile_m(itemsize):
    """Per-generation default pixel tile (lane axis).

    The kernel is pure HBM-read-bound (~512 B/pixel in f32 vs 12 B out), so
    the tile is chosen to move ~4-8 MiB per grid step (amortizing the
    ~0.35 us fixed per-step overhead) while fitting comfortably when
    double-buffered: 8192 on v5e/v6e, 16384 on v7x (higher HBM BW, 64 MiB
    per-TC VMEM), 2x the pixels for bf16 (same bytes/step).
    """
    try:
        vmem_bytes = pltpu.get_tpu_info().vmem_capacity_bytes
    except Exception:
        vmem_bytes = 128 << 20
    base = 16384 if vmem_bytes <= (64 << 20) else 8192
    if itemsize <= 2:  # bf16 I/O
        base *= 2
    return base


def decoder_forward(x_nchw, w1, w2, w3, b3, *, tile_m=None, batch_tile=None):
    """x_nchw: (N, 128, H, W) in f32 or bf16.  Weights in PyTorch Conv2d
    layout (out_c, in_c, 1, 1); b3: (3,).  Returns (N, 3, H, W) in x's dtype."""
    N, C, H, W = x_nchw.shape
    HW = H * W
    itemsize = jnp.dtype(x_nchw.dtype).itemsize

    # Guard: the folded-weight path is only valid for the default (non-legacy)
    # Decoder: 128->64->32->3 1x1 convs, bias only on the last, no activations.
    assert C == C_IN, f"Decoder expects {C_IN} input channels, got {C}"
    assert w1.shape[:2] == (C_MID1, C_IN), w1.shape
    assert w2.shape[:2] == (C_MID2, C_MID1), w2.shape
    assert w3.shape[:2] == (C_OUT, C_MID2), w3.shape
    assert b3.shape == (C_OUT,), b3.shape

    # Fold the three 1x1 convs into one (3, 128) matrix + bias (f32 fold,
    # cast to the activation dtype only for the streamed matmul operand).
    w1m = w1.reshape(C_MID1, C_IN).astype(jnp.float32)
    w2m = w2.reshape(C_MID2, C_MID1).astype(jnp.float32)
    w3m = w3.reshape(C_OUT, C_MID2).astype(jnp.float32)
    wt = (w3m @ w2m @ w1m).astype(x_nchw.dtype)      # (3, 128)
    b = b3.reshape(C_OUT, 1).astype(jnp.float32)     # (3, 1), stays f32

    # NCHW -> (N, C, H*W): a pure view, no transpose traffic through HBM.
    x3d = x_nchw.reshape(N, C_IN, HW)

    # --- pixel tile (lane axis) ---
    if tile_m is None:
        tile_m = _pick_tile_m(itemsize)
    tm = min(tile_m, HW)
    if tm < HW:
        tm = max(128, (tm // 128) * 128)  # partial rows must be 128-multiples

    # --- batch tile: widen for small images so each step still moves >=4 MiB ---
    if batch_tile is None:
        bytes_per_img_tile = C_IN * tm * itemsize
        bn = max(1, min(N, -(-(4 << 20) // bytes_per_img_tile)))
        bn = min(bn, 64)
    else:
        bn = max(1, min(N, batch_tile))

    # --- guarantee >= 2 grid steps so both v7x TensorCores get work ---
    if pl.cdiv(N, bn) * pl.cdiv(HW, tm) < 2:
        if N >= 2:
            bn = -(-N // 2)                                  # ceil(N/2)
        elif HW >= 256:
            tm = max(128, ((-(-HW // 2)) // 128) * 128)      # split pixels

    grid = (pl.cdiv(N, bn), pl.cdiv(HW, tm))

    # Scoped-VMEM budget: double-buffered input + output (C_OUT pads to 8
    # sublanes) + slack.  Explicit so the bigger tiles work under v5e's
    # 16 MiB scoped default and stay well inside v7x's 64 MiB physical VMEM.
    in_block = bn * C_IN * tm * itemsize
    out_block = bn * 8 * tm * itemsize
    vmem_limit = int(min(max(2 * in_block + 2 * out_block + (4 << 20),
                             16 << 20),
                         96 << 20))

    out3d = pl.pallas_call(
        _decoder_kernel,
        out_shape=jax.ShapeDtypeStruct((N, C_OUT, HW), x3d.dtype),
        grid_spec=pltpu.PrefetchScalarGridSpec(
            num_scalar_prefetch=0,
            grid=grid,
            in_specs=[
                pl.BlockSpec((bn, C_IN, tm), lambda n, i: (n, 0, i)),
                pl.BlockSpec((C_OUT, C_IN), lambda n, i: (0, 0)),
                pl.BlockSpec((C_OUT, 1), lambda n, i: (0, 0)),
            ],
            out_specs=pl.BlockSpec((bn, C_OUT, tm), lambda n, i: (n, 0, i)),
        ),
        compiler_params=pltpu.CompilerParams(
            dimension_semantics=("parallel", "parallel"),
            vmem_limit_bytes=vmem_limit),
    )(x3d, wt, b)

    # Ragged last blocks rely on Pallas boundary masking for stores; the
    # clamped input window reads real (possibly duplicated) data, so there is
    # no NaN hazard -- do not "fix" with explicit masking.
    return out3d.reshape(N, C_OUT, H, W)


def _reference_forward(x_nchw, w1, w2, w3, b3):
    # Pure-JAX reference: the un-folded three-matmul chain in NHWC, f32.
    N, C, H, W = x_nchw.shape
    x = jnp.transpose(x_nchw, (0, 2, 3, 1)).reshape(-1, C).astype(jnp.float32)
    h = x @ jnp.transpose(w1.reshape(C_MID1, C_IN))
    h = h @ jnp.transpose(w2.reshape(C_MID2, C_MID1))
    o = h @ jnp.transpose(w3.reshape(C_OUT, C_MID2)) + b3
    return jnp.transpose(o.reshape(N, H, W, C_OUT), (0, 3, 1, 2))


if __name__ == "__main__":
    key = jax.random.PRNGKey(0)
    k_x, k1, k2, k3, kb = jax.random.split(key, 5)

    # Small deterministic example: batch=2, 128 channels (required by the
    # module), spatial 16x16.
    x = jax.random.normal(k_x, (2, C_IN, 16, 16), dtype=jnp.float32)

    # Deterministic synthetic parameters (PyTorch Conv2d weight shapes).
    w1 = 0.05 * jax.random.normal(k1, (C_MID1, C_IN, 1, 1), dtype=jnp.float32)
    w2 = 0.05 * jax.random.normal(k2, (C_MID2, C_MID1, 1, 1), dtype=jnp.float32)
    w3 = 0.05 * jax.random.normal(k3, (C_OUT, C_MID2, 1, 1), dtype=jnp.float32)
    b3 = 0.05 * jax.random.normal(kb, (C_OUT,), dtype=jnp.float32)

    ref = jax.block_until_ready(_reference_forward(x, w1, w2, w3, b3))

    # f32 path.
    out = jax.block_until_ready(decoder_forward(x, w1, w2, w3, b3))
    assert out.shape == (2, 3, 16, 16), out.shape
    assert jnp.allclose(out, ref, atol=1e-4, rtol=1e-4), "f32 mismatch vs reference"

    # bf16 I/O path (halves HBM read traffic on this read-bound kernel).
    out_bf16 = jax.block_until_ready(
        decoder_forward(x.astype(jnp.bfloat16), w1, w2, w3, b3))
    assert out_bf16.shape == (2, 3, 16, 16), out_bf16.shape
    assert out_bf16.dtype == jnp.bfloat16
    assert jnp.allclose(out_bf16.astype(jnp.float32), ref, atol=2e-2, rtol=2e-2), \
        "bf16 mismatch vs reference"

    print("KERNEL_OK")
</pallas_src>

<mosaic_0001>
module attributes {stable_mosaic.version = 11 : i64} {
  func.func @_decoder_kernel(%arg0: i32, %arg1: i32, %arg2: memref<1x128x256xf32, #tpu.memory_space<vmem>>, %arg3: memref<3x128xf32, #tpu.memory_space<vmem>>, %arg4: memref<3x1xf32, #tpu.memory_space<vmem>>, %arg5: memref<1x3x256xf32, #tpu.memory_space<vmem>>) attributes {dimension_semantics = [#tpu.dimension_semantics<parallel>, #tpu.dimension_semantics<parallel>], iteration_bounds = array<i64: 2, 1>, scalar_prefetch = 0 : i64, scratch_operands = 0 : i64, tpu.core_type = #tpu.core_type<tc>, window_params = [{transform_indices = @transform_0, window_bounds = array<i64: 1, 128, 256>}, {pipeline_mode = #tpu.pipeline_mode<synchronous>, transform_indices = @transform_1, window_bounds = array<i64: 3, 128>}, {pipeline_mode = #tpu.pipeline_mode<synchronous>, transform_indices = @transform_2, window_bounds = array<i64: 3, 1>}, {transform_indices = @transform_3, window_bounds = array<i64: 1, 3, 256>}]} {
    %c0 = arith.constant 0 : index
    %c0_0 = arith.constant 0 : index
    %0 = vector.load %arg3[%c0, %c0_0] : memref<3x128xf32, #tpu.memory_space<vmem>>, vector<3x128xf32>
    %c0_1 = arith.constant 0 : index
    %c0_2 = arith.constant 0 : index
    %1 = vector.load %arg4[%c0_1, %c0_2] : memref<3x1xf32, #tpu.memory_space<vmem>>, vector<3x1xf32>
    %c0_3 = arith.constant 0 : index
    %c0_4 = arith.constant 0 : index
    %c0_5 = arith.constant 0 : index
    %2 = vector.load %arg2[%c0_3, %c0_4, %c0_5] : memref<1x128x256xf32, #tpu.memory_space<vmem>>, vector<1x128x256xf32>
    %3 = vector.shape_cast %2 : vector<1x128x256xf32> to vector<128x256xf32>
    %cst = arith.constant dense<0.000000e+00> : vector<3x256xf32>
    %4 = tpu.matmul %0, %3, %cst {dimension_numbers = #tpu.dot_dimension_numbers<[1], [0], [0], [1], [0, 0, 1, 1], [], []>} : vector<3x128xf32>, vector<128x256xf32>, vector<3x256xf32> -> vector<3x256xf32>
    %5 = vector.broadcast %1 : vector<3x1xf32> to vector<3x256xf32>
    %6 = arith.addf %4, %5 : vector<3x256xf32>
    %c0_6 = arith.constant 0 : index
    %c0_7 = arith.constant 0 : index
    %c0_8 = arith.constant 0 : index
    %7 = vector.load %arg5[%c0_6, %c0_7, %c0_8] : memref<1x3x256xf32, #tpu.memory_space<vmem>>, vector<1x3x256xf32>
    %8 = vector.shape_cast %7 : vector<1x3x256xf32> to vector<3x256xf32>
    %9 = vector.shape_cast %6 : vector<3x256xf32> to vector<1x3x256xf32>
    tpu.vector_store %arg5[%c0_6, %c0_7, %c0_8], %9 {strides = array<i32>} : memref<1x3x256xf32, #tpu.memory_space<vmem>>, vector<1x3x256xf32>,
    return
  }
  func.func @transform_0(%arg0: i32, %arg1: i32) -> (i32, i32, i32) {
    %c0_i32 = arith.constant 0 : i32
    %c0_i32_0 = arith.constant 0 : i32
    return %arg0, %c0_i32, %arg1 : i32, i32, i32
  }
  func.func @transform_1(%arg0: i32, %arg1: i32) -> (i32, i32) {
    %c0_i32 = arith.constant 0 : i32
    %c0_i32_0 = arith.constant 0 : i32
    %c0_i32_1 = arith.constant 0 : i32
    return %c0_i32, %c0_i32_0 : i32, i32
  }
  func.func @transform_2(%arg0: i32, %arg1: i32) -> (i32, i32) {
    %c0_i32 = arith.constant 0 : i32
    %c0_i32_0 = arith.constant 0 : i32
    %c0_i32_1 = arith.constant 0 : i32
    return %c0_i32, %c0_i32_0 : i32, i32
  }
  func.func @transform_3(%arg0: i32, %arg1: i32) -> (i32, i32, i32) {
    %c0_i32 = arith.constant 0 : i32
    %c0_i32_0 = arith.constant 0 : i32
    return %arg0, %c0_i32, %arg1 : i32, i32, i32
  }
}

</mosaic_0001>

<llo_original>
// kernel: tpu_custom_call.1
$region0: #{tpu_custom_call.1}
  #allocation0 [shape = 'u32[]', space=smem, size = 0x4, offset = 0x4, fixed_abs, tag = 'smem constant byte address 0x4 - core index']
  #allocation1 [shape = 'u32[72,128]{1,0:T(1,128)}', space=vmem, size = 0x9000, scoped, tag = 'internal scratch']
  %s0 = inlined_call_operand.hbm [shape: f32[2,128,256], index: 0, kind: input, shape index: {}]
  %s1 = inlined_call_operand.vmem [shape: f32[3,128], index: 1, kind: input, shape index: {}]
  %s2 = inlined_call_operand.vmem [shape: f32[3,1], index: 2, kind: input, shape index: {}]
  %s3 = inlined_call_operand.vmem [shape: f32[2,3,256], index: 3, kind: output, shape index: {}]
  %s4 = sld [smem:[#allocation0]]
  $region49: #{tpu_custom_call.1} parent=0
    _
  %s6 = ssub.s32 1, %s4
  %s7 = scalar_select 0, %s6, %s4
  $region1: #{tpu_custom_call.1} parent=0
    #allocation2 [shape = 'u8[262144]{0}', space=vmem, size = 0x40000, scoped, tag = 'input window, operand 0']
    #allocation3 [shape = 's32[2]{0}', space=sflag, size = 0x8, scoped, tag = 'scoped memory for tpu_custom_call.1']
    %8 = vsyncpa [#allocation3], 0
    %s9 = scalar_lea.sflag [#allocation3], 1
    %10 = vsyncpa %s9, 0
    loop: start=0, step=1, limit=4
    $region2: #{tpu_custom_call.1} parent=1 // loop_pre_header
      _
    $region3: #{tpu_custom_call.1} parent=1 // loop_header
      %s12 = sphi 0, %s16
      %p13 = scmp.ge.s32.totalorder %s12, 4
      %s19 = sphi 0, %s31
      %s20 = sphi 0, %s27
      %s21 = sphi 0, %s19
      %s22 = sphi 0, %s20
      %s23 = sphi 0, %s21
      %s24 = sphi 0, %s22
      %s36 = sphi 0, %s38
      %s39 = sphi 0, %s36
      %s40 = sphi 0, %s39
      %s56 = sphi 0, %s40
      %s60 = sphi 0, %s60
      %s62 = sphi 0, %s60
      %s63 = sphi 0, %s62
      %s77 = sphi 0, %s63
      %s81 = sphi 0, %s81
      %s83 = sphi 0, %s81
      %s84 = sphi 0, %s83
      %s98 = sphi 0, %s84
      %s106 = sphi 0, %s108
      %s109 = sphi 0, %s106
      %s110 = sphi 0, %s109
      %s126 = sphi 0, %s110
    $region4: #{tpu_custom_call.1} parent=1 // loop_header_branch
      %15 = sbr.rel (%p13) target = $region8
    $region5: #{tpu_custom_call.1} parent=1 // loop_body
      %s17 = ssub.s32 %s12, 1
      %s18 = ssub.s32 %s12, 2
      %s25 = sadd.s32 1, %s20
      %p26 = scmp.ge.s32.totalorder %s25, 1
      %s27 = scalar_select %p26, 0, %s25
      %s28 = sadd.s32 1, %s19
      %s29 = scalar_select %p26, %s28, %s19
      %p30 = scmp.ge.s32.totalorder %s29, 2
      %s31 = scalar_select %p30, 0, %s29
      %s32 = ssub.s32 %s19, %s31
      %s33 = ssub.s32 %s20, %s27
      %s34 = sor.u32 %s32, %s33
      %p35 = scmp.eq.s32.totalorder %s34, 0
      %s37 = sadd.s32 %s36, 1
      %s38 = scalar_select %p35, %s36, %s37
      %p41 = pneg %p35
      %p42 = scmp.eq.s32.totalorder %s12, 1
      %p43 = por %p41, %p42
      %p44 = scmp.ne.s32.totalorder %s36, %s39
      %p45 = scmp.eq.s32.totalorder %s12, 0
      %p46 = por %p44, %p45
      %p47 = scmp.ne.s32.totalorder %s36, %s39
      %p48 = scmp.eq.s32.totalorder %s17, 1
      %p49 = por %p47, %p48
      %p50 = scmp.ne.s32.totalorder %s39, %s40
      %p51 = scmp.eq.s32.totalorder %s17, 0
      %p52 = por %p50, %p51
      %p53 = scmp.ne.s32.totalorder %s39, %s40
      %p54 = scmp.eq.s32.totalorder %s18, 1
      %p55 = por %p53, %p54
      %p57 = scmp.ne.s32.totalorder %s40, %s56
      %p58 = scmp.eq.s32.totalorder %s18, 0
      %p59 = por %p57, %p58
      %s61 = sadd.s32 %s60, 1
      %p64 = scmp.eq.s32.totalorder %s12, 1
      %p65 = scmp.ne.s32.totalorder %s60, %s62
      %p66 = scmp.eq.s32.totalorder %s12, 0
      %p67 = por %p65, %p66
      %p68 = scmp.ne.s32.totalorder %s60, %s62
      %p69 = scmp.eq.s32.totalorder %s17, 1
      %p70 = por %p68, %p69
      %p71 = scmp.ne.s32.totalorder %s62, %s63
      %p72 = scmp.eq.s32.totalorder %s17, 0
      %p73 = por %p71, %p72
      %p74 = scmp.ne.s32.totalorder %s62, %s63
      %p75 = scmp.eq.s32.totalorder %s18, 1
      %p76 = por %p74, %p75
      %p78 = scmp.ne.s32.totalorder %s63, %s77
      %p79 = scmp.eq.s32.totalorder %s18, 0
      %p80 = por %p78, %p79
      %s82 = sadd.s32 %s81, 1
      %p85 = scmp.eq.s32.totalorder %s12, 1
      %p86 = scmp.ne.s32.totalorder %s81, %s83
      %p87 = scmp.eq.s32.totalorder %s12, 0
      %p88 = por %p86, %p87
      %p89 = scmp.ne.s32.totalorder %s81, %s83
      %p90 = scmp.eq.s32.totalorder %s17, 1
      %p91 = por %p89, %p90
      %p92 = scmp.ne.s32.totalorder %s83, %s84
      %p93 = scmp.eq.s32.totalorder %s17, 0
      %p94 = por %p92, %p93
      %p95 = scmp.ne.s32.totalorder %s83, %s84
      %p96 = scmp.eq.s32.totalorder %s18, 1
      %p97 = por %p95, %p96
      %p99 = scmp.ne.s32.totalorder %s84, %s98
      %p100 = scmp.eq.s32.totalorder %s18, 0
      %p101 = por %p99, %p100
      %s102 = ssub.s32 %s19, %s31
      %s103 = ssub.s32 %s20, %s27
      %s104 = sor.u32 %s102, %s103
      %p105 = scmp.eq.s32.totalorder %s104, 0
      %s107 = sadd.s32 %s106, 1
      %s108 = scalar_select %p105, %s106, %s107
      %p111 = pneg %p105
      %p112 = scmp.eq.s32.totalorder %s12, 1
      %p113 = por %p111, %p112
      %p114 = scmp.ne.s32.totalorder %s106, %s109
      %p115 = scmp.eq.s32.totalorder %s12, 0
      %p116 = por %p114, %p115
      %p117 = scmp.ne.s32.totalorder %s106, %s109
      %p118 = scmp.eq.s32.totalorder %s17, 1
      %p119 = por %p117, %p118
      %p120 = scmp.ne.s32.totalorder %s109, %s110
      %p121 = scmp.eq.s32.totalorder %s17, 0
      %p122 = por %p120, %p121
      %p123 = scmp.ne.s32.totalorder %s109, %s110
      %p124 = scmp.eq.s32.totalorder %s18, 1
      %p125 = por %p123, %p124
      %p127 = scmp.ne.s32.totalorder %s110, %s126
      %p128 = scmp.eq.s32.totalorder %s18, 0
      %p129 = por %p127, %p128
      %p130 = scmp.le.s32.totalorder 1, %s12
      %p131 = scmp.lt.s32.totalorder %s12, 3
      %p132 = pnand %p130, %p131
      %p133 = pneg %p132
      // Predicated region
      $region9: #{tpu_custom_call.1} parent=5 // pred_check
        _
      $region10: #{tpu_custom_call.1} parent=5 // pred_check_branch
        %135 = sbr.rel (%p132) target = $region12
      $region11: #{tpu_custom_call.1} parent=5 // pred_region
        %s136 = ssub.s32 %s12, 1
        // Predicated region
        $region13: #{tpu_custom_call.1} parent=11 // pred_check
          %p137 = pneg %p73
        $region14: #{tpu_custom_call.1} parent=11 // pred_check_branch
          %139 = sbr.rel (%p137) target = $region16
        $region15: #{tpu_custom_call.1} parent=11 // pred_region
          _
        $region16: #{tpu_custom_call.1} parent=11 // pred_fallthru
          _
        // Predicated region
        $region17: #{tpu_custom_call.1} parent=11 // pred_check
          %p140 = pneg %p94
        $region18: #{tpu_custom_call.1} parent=11 // pred_check_branch
          %142 = sbr.rel (%p140) target = $region20
        $region19: #{tpu_custom_call.1} parent=11 // pred_region
          _
        $region20: #{tpu_custom_call.1} parent=11 // pred_fallthru
          _
      $region12: #{tpu_custom_call.1} parent=5 // pred_fallthru
        _
      %p143 = scmp.lt.s32.totalorder %s12, 2
      // Predicated region
      $region21: #{tpu_custom_call.1} parent=5 // pred_check
        %p144 = pneg %p143
      $region22: #{tpu_custom_call.1} parent=5 // pred_check_branch
        %146 = sbr.rel (%p144) target = $region24
      $region23: #{tpu_custom_call.1} parent=5 // pred_region
        // Predicated region
        $region25: #{tpu_custom_call.1} parent=23 // pred_check
          %p147 = pneg %p46
        $region26: #{tpu_custom_call.1} parent=23 // pred_check_branch
          %149 = sbr.rel (%p147) target = $region28
        $region27: #{tpu_custom_call.1} parent=23 // pred_region
          %s150 = sand.u32 %s36, 1
          %s151 = scalar_lea.sflag [#allocation3], %s150
          %s152 = sand.u32 %s36, 1
          %s153 = smul.addr %s152, 256
          %s154 = scalar_lea.vmem [#allocation2], %s153
          %s155 = smul.u32 2, %s20
          %157 = vsyncadd %s151, 0
          %s158 = smul.addr %s19, 32
          %s159 = sadd.s32 %s155, %s158
          %s160 = smul.addr %s159, 8
          %s161 = scalar_lea.hbm %s0, %s160
          %s162 = sshll.u32 %s161, 4
          %s163 = int_to_ptr.hbm [resolvable:$true] %s162
          %s164 = sshll.u32 %s154, 4
          %s165 = int_to_ptr.vmem [resolvable:$true] %s164
          %170 = dma.hbm_to_vmem [thread:$0]  %s163, 4096, %s165, %s151, 256, 256, 16
        $region28: #{tpu_custom_call.1} parent=23 // pred_fallthru
          _
      $region24: #{tpu_custom_call.1} parent=5 // pred_fallthru
        _
      %p171 = scmp.le.s32.totalorder 1, %s12
      %p172 = scmp.lt.s32.totalorder %s12, 3
      %p173 = pnand %p171, %p172
      %p174 = pneg %p173
      // Predicated region
      $region29: #{tpu_custom_call.1} parent=5 // pred_check
        _
      $region30: #{tpu_custom_call.1} parent=5 // pred_check_branch
        %176 = sbr.rel (%p173) target = $region32
      $region31: #{tpu_custom_call.1} parent=5 // pred_region
        %s177 = ssub.s32 %s12, 1
        %s178 = sand.u32 %s39, 1
        %s179 = scalar_lea.sflag [#allocation3], %s178
        %s180 = sand.u32 %s39, 1
        %s181 = smul.addr %s180, 256
        %s182 = scalar_lea.vmem [#allocation2], %s181
        // Predicated region
        $region33: #{tpu_custom_call.1} parent=31 // pred_check
          %p183 = pneg %p52
        $region34: #{tpu_custom_call.1} parent=31 // pred_check_branch
          %185 = sbr.rel (%p183) target = $region36
        $region35: #{tpu_custom_call.1} parent=31 // pred_region
          %187 = dma.done %s179, 4096
        $region36: #{tpu_custom_call.1} parent=31 // pred_fallthru
          _
        %s188 = sand.u32 %s39, 1
        %s189 = scalar_lea.sflag [#allocation3], %s188
        %s190 = sand.u32 %s39, 1
        %s191 = smul.addr %s190, 256
        %s192 = scalar_lea.vmem [#allocation2], %s191
        %p193 = pneg %p52
        %p194 = pneg %p49
        %p195 = pneg %p73
        %p196 = pneg %p70
        %p197 = pneg %p94
        %p198 = pneg %p91
        %p199 = pneg %p122
        %p200 = pneg %p119
        %s201 = smul.u32 2, %s22
        %p202 = scmp.lt.s32.totalorder %s21, 1
        %s203 = scalar_select %p202, %s21, 1
        %p204 = scmp.lt.s32.totalorder %s201, 1
        %s205 = scalar_select %p204, %s201, 1
        %s206 = smul.addr %s203, 2
        %s207 = sadd.s32 %s205, %s206
        %s208 = smul.addr %s207, 4
        %s209 = scalar_lea.vmem %s3, %s208
        %s210 = smul.u32 2, %s22
        %s211 = smul.u32 2, %s22
        %p212 = scmp.lt.s32.totalorder %s21, 1
        %s213 = scalar_select %p212, %s21, 1
        %p214 = scmp.lt.s32.totalorder %s211, 1
        %s215 = scalar_select %p214, %s211, 1
        %s216 = smul.addr %s213, 2
        %s217 = sadd.s32 %s215, %s216
        %s218 = smul.addr %s217, 4
        %s219 = scalar_lea.vmem %s3, %s218
        %s220 = smul.u32 2, %s22
        %v221 = vld [vmem:[%s1] sm:$0x7]
        %v222 = vld [vmem:[%s2] sm:$0x7]
        %v223 = vld [vmem:[%s182] sm:$0xff]
        %v224 = vld [vmem:[%s182 + $0x8] sm:$0xff]
        %v225 = vld [vmem:[%s182 + $0x10] sm:$0xff]
        %v226 = vld [vmem:[%s182 + $0x18] sm:$0xff]
        %v227 = vld [vmem:[%s182 + $0x20] sm:$0xff]
        %v228 = vld [vmem:[%s182 + $0x28] sm:$0xff]
        %v229 = vld [vmem:[%s182 + $0x30] sm:$0xff]
        %v230 = vld [vmem:[%s182 + $0x38] sm:$0xff]
        %v231 = vld [vmem:[%s182 + $0x40] sm:$0xff]
        %v232 = vld [vmem:[%s182 + $0x48] sm:$0xff]
        %v233 = vld [vmem:[%s182 + $0x50] sm:$0xff]
        %v234 = vld [vmem:[%s182 + $0x58] sm:$0xff]
        %v235 = vld [vmem:[%s182 + $0x60] sm:$0xff]
        %v236 = vld [vmem:[%s182 + $0x68] sm:$0xff]
        %v237 = vld [vmem:[%s182 + $0x70] sm:$0xff]
        %v238 = vld [vmem:[%s182 + $0x78] sm:$0xff]
        %v239 = vld [vmem:[%s182 + $0x80] sm:$0xff]
        %v240 = vld [vmem:[%s182 + $0x88] sm:$0xff]
        %v241 = vld [vmem:[%s182 + $0x90] sm:$0xff]
        %v242 = vld [vmem:[%s182 + $0x98] sm:$0xff]
        %v243 = vld [vmem:[%s182 + $0xa0] sm:$0xff]
        %v244 = vld [vmem:[%s182 + $0xa8] sm:$0xff]
        %v245 = vld [vmem:[%s182 + $0xb0] sm:$0xff]
        %v246 = vld [vmem:[%s182 + $0xb8] sm:$0xff]
        %v247 = vld [vmem:[%s182 + $0xc0] sm:$0xff]
        %v248 = vld [vmem:[%s182 + $0xc8] sm:$0xff]
        %v249 = vld [vmem:[%s182 + $0xd0] sm:$0xff]
        %v250 = vld [vmem:[%s182 + $0xd8] sm:$0xff]
        %v251 = vld [vmem:[%s182 + $0xe0] sm:$0xff]
        %v252 = vld [vmem:[%s182 + $0xe8] sm:$0xff]
        %v253 = vld [vmem:[%s182 + $0xf0] sm:$0xff]
        %v254 = vld [vmem:[%s182 + $0xf8] sm:$0xff]
        %256 = vset.pattern.permute.xlu0 0
        %257 = vperm.xlu0 %256, %v222
        %v258 = vpop.permute.xlu0 %257
        %260 = vmatpush.msra.mxu0 %v253
        %261 = vmatpush.msra.mxu0 %v251
        %262 = vmatpush.msra.mxu0 %v249
        %263 = vmatpush.msra.mxu0 %v247
        %264 = vmatpush.msra.mxu0 %v245
        %265 = vmatpush.msra.mxu0 %v243
        %266 = vmatpush.msra.mxu0 %v241
        %267 = vmatpush.msra.mxu0 %v239
        %268 = vmatpush.msra.mxu0 %v237
        %269 = vmatpush.msra.mxu0 %v235
        %270 = vmatpush.msra.mxu0 %v233
        %271 = vmatpush.msra.mxu0 %v231
        %272 = vmatpush.msra.mxu0 %v229
        %273 = vmatpush.msra.mxu0 %v227
        %274 = vmatpush.msra.mxu0 %v225
        %275 = vmatpush.msra.mxu0 %v223
        %276 = vmatmul.f32.gmra.mxu0 %v221
        %v277 = vpop.f32.mrf.mxu0
        %v278 = vadd.f32 %v258, %v277
        %279 = vdwg.mxu0
        %280 = vmatpush.msra.mxu0 %v254
        %281 = vmatpush.msra.mxu0 %v252
        %282 = vmatpush.msra.mxu0 %v250
        %283 = vmatpush.msra.mxu0 %v248
        %284 = vmatpush.msra.mxu0 %v246
        %285 = vmatpush.msra.mxu0 %v244
        %286 = vmatpush.msra.mxu0 %v242
        %287 = vmatpush.msra.mxu0 %v240
        %288 = vmatpush.msra.mxu0 %v238
        %289 = vmatpush.msra.mxu0 %v236
        %290 = vmatpush.msra.mxu0 %v234
        %291 = vmatpush.msra.mxu0 %v232
        %292 = vmatpush.msra.mxu0 %v230
        %293 = vmatpush.msra.mxu0 %v228
        %294 = vmatpush.msra.mxu0 %v226
        %295 = vmatpush.msra.mxu0 %v224
        %296 = vmatmul.f32.gmra.mxu0 %v221
        %v297 = vpop.f32.mrf.mxu0
        %v298 = vadd.f32 %v258, %v297
        %299 = vdwg.mxu0
        %v302 = vrot.slane %v298, 4
        %vm303 = vcmask 1043456
        %v304 = vsel %vm303, %v278, %v302
        %306 = vst [vmem:[%s219] sm:$0x77] %v304
        %s307 = smul.u32 2, %s22
        %p308 = scmp.lt.s32.totalorder %s21, 1
        %s309 = scalar_select %p308, %s21, 1
        %p310 = scmp.lt.s32.totalorder %s307, 1
        %s311 = scalar_select %p310, %s307, 1
        %s312 = smul.addr %s309, 2
        %s313 = sadd.s32 %s311, %s312
        %s314 = smul.addr %s313, 4
        %s315 = scalar_lea.vmem %s3, %s314
        // Predicated region
        $region37: #{tpu_custom_call.1} parent=31 // pred_check
          %p316 = pneg %p119
        $region38: #{tpu_custom_call.1} parent=31 // pred_check_branch
          %318 = sbr.rel (%p316) target = $region40
        $region39: #{tpu_custom_call.1} parent=31 // pred_region
          %s319 = smul.u32 2, %s22
        $region40: #{tpu_custom_call.1} parent=31 // pred_fallthru
          _
      $region32: #{tpu_custom_call.1} parent=5 // pred_fallthru
        _
      %p320 = scmp.le.s32.totalorder 2, %s12
      // Predicated region
      $region41: #{tpu_custom_call.1} parent=5 // pred_check
        %p321 = pneg %p320
      $region42: #{tpu_custom_call.1} parent=5 // pred_check_branch
        %323 = sbr.rel (%p321) target = $region44
      $region43: #{tpu_custom_call.1} parent=5 // pred_region
        %s324 = ssub.s32 %s12, 2
        // Predicated region
        $region45: #{tpu_custom_call.1} parent=43 // pred_check
          %p325 = pneg %p125
        $region46: #{tpu_custom_call.1} parent=43 // pred_check_branch
          %327 = sbr.rel (%p325) target = $region48
        $region47: #{tpu_custom_call.1} parent=43 // pred_region
          %s328 = smul.u32 2, %s24
          %p329 = scmp.lt.s32.totalorder %s23, 1
          %s330 = scalar_select %p329, %s23, 1
          %p331 = scmp.lt.s32.totalorder %s328, 1
          %s332 = scalar_select %p331, %s328, 1
          %s333 = smul.addr %s330, 2
          %s334 = sadd.s32 %s332, %s333
          %s335 = smul.addr %s334, 4
          %s336 = scalar_lea.vmem %s3, %s335
        $region48: #{tpu_custom_call.1} parent=43 // pred_fallthru
          _
      $region44: #{tpu_custom_call.1} parent=5 // pred_fallthru
        _
    $region6: #{tpu_custom_call.1} parent=1 // loop_footer
      %s16 = sadd.s32 1, %s12
    $region7: #{tpu_custom_call.1} parent=1 // loop_footer_branch
      %11 = sbr.rel target = $region3
    $region8: #{tpu_custom_call.1} parent=1 // loop_exit
      _
    %337 = vsyncpa [#allocation3], 1
    %s338 = scalar_lea.sflag [#allocation3], 1
    %339 = vsyncpa %s338, 1

</llo_original>
